<compile_context>
chip_gen: v5e
topology: v5e:2x2
jax: 0.10.0
libtpu: 0.0.40
codegen_flags: <defaults>
</compile_context>

<pallas_src>
import jax
import jax.numpy as jnp
from jax.experimental import pallas as pl
from jax.experimental.pallas import tpu as pltpu

D1, D2 = 3, 8          # x1 / x2 feature widths from the PyTorch module
D = D1 + D2            # 11 (concat width; repaired Linear is D -> D)
DP = 128               # lane-dense padded feature width
C_ROWS = 24            # packed param block rows (3 sublane tiles)


def pack_params(w1, b1, w2, b2):
    """One-time host-side packing of the (11,11) layers into lane-dense blocks.

    Packed C layout, shape (24, 256):
      rows 0:3 ,  cols   0:128 -> E1  (embeds x1 into concat cols 0:3)
      rows 0:3 ,  cols 128:256 -> W1[0:3 , :]  zero-padded
      rows 8:16,  cols   0:128 -> E2  (embeds x2 into concat cols 3:11)
      rows 8:16,  cols 128:256 -> W1[3:11, :]  zero-padded
      row  16  ,  cols   0:128 -> b2  zero-padded
      row  16  ,  cols 128:256 -> b1  zero-padded
    """
    w1 = w1.astype(jnp.float32)
    w2 = w2.astype(jnp.float32)
    b1 = b1.astype(jnp.float32)
    b2 = b2.astype(jnp.float32)

    c = jnp.zeros((C_ROWS, 2 * DP), jnp.float32)
    e1 = jnp.eye(D1, DP, dtype=jnp.float32)          # ones at [i, i]
    e2 = jnp.eye(D2, DP, k=D1, dtype=jnp.float32)    # ones at [i, i + 3]
    c = c.at[0:D1, 0:DP].set(e1)
    c = c.at[0:D1, DP:DP + D].set(w1[0:D1, :])
    c = c.at[8:8 + D2, 0:DP].set(e2)
    c = c.at[8:8 + D2, DP:DP + D].set(w1[D1:D, :])
    c = c.at[16, 0:D].set(b2)
    c = c.at[16, DP:DP + D].set(b1)

    w2p = jnp.zeros((DP, DP), jnp.float32).at[0:D, 0:D].set(w2)
    return c, w2p


def _fused_residual_mlp_kernel(x1_ref, x2_ref, c_ref, w2_ref, out_ref):
    x1 = x1_ref[...]                 # (TB, 3)
    x2 = x2_ref[...]                 # (TB, 8)
    c = c_ref[...]                   # (24, 256) packed params (VMEM-resident)

    c1 = c[0:D1, :]                  # (3, 256)  = [E1 | W1a]
    c2 = c[8:8 + D2, :]              # (8, 256)  = [E2 | W1b]
    bias = c[16:17, :]               # (1, 256)  = [b2_pad | b1_pad]
    b2 = bias[:, 0:DP]               # (1, 128)
    b1 = bias[:, DP:2 * DP]          # (1, 128)

    # One pair of lane-dense matmuls yields both the padded concat (left half)
    # and the first layer's pre-activation (right half).
    g = (jnp.dot(x1, c1, preferred_element_type=jnp.float32)
         + jnp.dot(x2, c2, preferred_element_type=jnp.float32))   # (TB, 256)

    y = g[:, 0:DP]                          # padded cat(x1, x2); cols 11.. are 0
    h1 = g[:, DP:2 * DP] + b1               # Linear1 pre-activation
    y0 = y + jnp.maximum(h1, 0.0)           # residual block 1

    h2 = jnp.dot(y0, w2_ref[...], preferred_element_type=jnp.float32) + b2
    out_ref[...] = y0 + jnp.maximum(h2, 0.0)  # residual block 2 (padded cols stay 0)


def model_forward(x1, x2, c_packed, w2_packed, *, block_b=512):
    """Runs the fused residual MLP. Accepts any batch size B."""
    B = x1.shape[0]
    TB = min(B, block_b)
    B_pad = ((B + TB - 1) // TB) * TB
    x1 = x1.astype(jnp.float32)
    x2 = x2.astype(jnp.float32)
    if B_pad != B:
        x1 = jnp.pad(x1, ((0, B_pad - B), (0, 0)))
        x2 = jnp.pad(x2, ((0, B_pad - B), (0, 0)))

    out = pl.pallas_call(
        _fused_residual_mlp_kernel,
        out_shape=jax.ShapeDtypeStruct((B_pad, DP), jnp.float32),
        grid=(B_pad // TB,),
        in_specs=[
            pl.BlockSpec((TB, D1), lambda i: (i, 0)),        # x1 tile
            pl.BlockSpec((TB, D2), lambda i: (i, 0)),        # x2 tile
            pl.BlockSpec((C_ROWS, 2 * DP), lambda i: (0, 0)),  # packed params (resident)
            pl.BlockSpec((DP, DP), lambda i: (0, 0)),        # W2 padded (resident)
        ],
        out_specs=pl.BlockSpec((TB, DP), lambda i: (i, 0)),
        compiler_params=pltpu.CompilerParams(
            dimension_semantics=("parallel",)),
    )(x1, x2, c_packed, w2_packed)

    return out[:B, :D]


def _reference(x1, x2, w1, b1, w2, b2):
    y = jnp.concatenate([x1, x2], axis=1)
    y0 = y + jnp.maximum(y @ w1 + b1, 0.0)
    y1 = y0 + jnp.maximum(y0 @ w2 + b2, 0.0)
    return y1


if __name__ == "__main__":
    key = jax.random.PRNGKey(0)
    k1, k2, kw1, kb1, kw2, kb2, kb = jax.random.split(key, 7)

    # Shapes from the PyTorch spec: x1 = randn(1, 3), x2 = randn(1, 8).
    B = 1
    x1 = jax.random.normal(k1, (B, D1), dtype=jnp.float32)
    x2 = jax.random.normal(k2, (B, D2), dtype=jnp.float32)

    # Deterministic params (roughly nn.Linear uniform init), stored as (in, out).
    lim = 1.0 / jnp.sqrt(D)
    w1 = jax.random.uniform(kw1, (D, D), minval=-lim, maxval=lim, dtype=jnp.float32)
    b1 = jax.random.uniform(kb1, (D,), minval=-lim, maxval=lim, dtype=jnp.float32)
    w2 = jax.random.uniform(kw2, (D, D), minval=-lim, maxval=lim, dtype=jnp.float32)
    b2 = jax.random.uniform(kb2, (D,), minval=-lim, maxval=lim, dtype=jnp.float32)

    c_packed, w2_packed = pack_params(w1, b1, w2, b2)

    # Spec-sized run (B = 1).
    out = jax.block_until_ready(model_forward(x1, x2, c_packed, w2_packed))
    ref = _reference(x1, x2, w1, b1, w2, b2)
    assert out.shape == (B, D), out.shape
    assert jnp.allclose(out, ref, atol=1e-5, rtol=1e-5), "mismatch vs reference (B=1)"

    # Small batched run exercising the tiled/parallel grid path (grid=(2,)).
    Bb = 16
    x1b = jax.random.normal(kb, (Bb, D1), dtype=jnp.float32)
    x2b = jax.random.normal(k2, (Bb, D2), dtype=jnp.float32)
    outb = jax.block_until_ready(model_forward(x1b, x2b, c_packed, w2_packed, block_b=8))
    refb = _reference(x1b, x2b, w1, b1, w2, b2)
    assert outb.shape == (Bb, D), outb.shape
    assert jnp.allclose(outb, refb, atol=1e-5, rtol=1e-5), "mismatch vs reference (B=16)"

    print("KERNEL_OK")
</pallas_src>

<mosaic_0001>
module attributes {stable_mosaic.version = 11 : i64} {
  func.func @_fused_residual_mlp_kernel(%arg0: i32, %arg1: memref<1x3xf32, #tpu.memory_space<vmem>>, %arg2: memref<1x8xf32, #tpu.memory_space<vmem>>, %arg3: memref<24x256xf32, #tpu.memory_space<vmem>>, %arg4: memref<128x128xf32, #tpu.memory_space<vmem>>, %arg5: memref<1x128xf32, #tpu.memory_space<vmem>>) attributes {dimension_semantics = [#tpu.dimension_semantics<parallel>], iteration_bounds = array<i64: 1>, scalar_prefetch = 0 : i64, scratch_operands = 0 : i64, tpu.core_type = #tpu.core_type<tc>, window_params = [{transform_indices = @transform_0, window_bounds = array<i64: 1, 3>}, {transform_indices = @transform_1, window_bounds = array<i64: 1, 8>}, {pipeline_mode = #tpu.pipeline_mode<synchronous>, transform_indices = @transform_2, window_bounds = array<i64: 24, 256>}, {pipeline_mode = #tpu.pipeline_mode<synchronous>, transform_indices = @transform_3, window_bounds = array<i64: 128, 128>}, {transform_indices = @transform_4, window_bounds = array<i64: 1, 128>}]} {
    %c0 = arith.constant 0 : index
    %c0_0 = arith.constant 0 : index
    %0 = vector.load %arg1[%c0, %c0_0] : memref<1x3xf32, #tpu.memory_space<vmem>>, vector<1x3xf32>
    %c0_1 = arith.constant 0 : index
    %c0_2 = arith.constant 0 : index
    %1 = vector.load %arg2[%c0_1, %c0_2] : memref<1x8xf32, #tpu.memory_space<vmem>>, vector<1x8xf32>
    %c0_3 = arith.constant 0 : index
    %c0_4 = arith.constant 0 : index
    %2 = vector.load %arg3[%c0_3, %c0_4] : memref<24x256xf32, #tpu.memory_space<vmem>>, vector<24x256xf32>
    %3 = vector.extract_strided_slice %2 {offsets = [0, 0], sizes = [3, 256], strides = [1, 1]} : vector<24x256xf32> to vector<3x256xf32>
    %4 = vector.extract_strided_slice %2 {offsets = [8, 0], sizes = [8, 256], strides = [1, 1]} : vector<24x256xf32> to vector<8x256xf32>
    %5 = vector.extract_strided_slice %2 {offsets = [16, 0], sizes = [1, 256], strides = [1, 1]} : vector<24x256xf32> to vector<1x256xf32>
    %6 = vector.extract_strided_slice %5 {offsets = [0, 0], sizes = [1, 128], strides = [1, 1]} : vector<1x256xf32> to vector<1x128xf32>
    %7 = vector.extract_strided_slice %5 {offsets = [0, 128], sizes = [1, 128], strides = [1, 1]} : vector<1x256xf32> to vector<1x128xf32>
    %cst = arith.constant dense<0.000000e+00> : vector<1x256xf32>
    %8 = tpu.matmul %0, %3, %cst {dimension_numbers = #tpu.dot_dimension_numbers<[1], [0], [0], [1], [0, 0, 1, 1], [], []>} : vector<1x3xf32>, vector<3x256xf32>, vector<1x256xf32> -> vector<1x256xf32>
    %cst_5 = arith.constant dense<0.000000e+00> : vector<1x256xf32>
    %9 = tpu.matmul %1, %4, %cst_5 {dimension_numbers = #tpu.dot_dimension_numbers<[1], [0], [0], [1], [0, 0, 1, 1], [], []>} : vector<1x8xf32>, vector<8x256xf32>, vector<1x256xf32> -> vector<1x256xf32>
    %10 = arith.addf %8, %9 : vector<1x256xf32>
    %11 = vector.extract_strided_slice %10 {offsets = [0, 0], sizes = [1, 128], strides = [1, 1]} : vector<1x256xf32> to vector<1x128xf32>
    %12 = vector.extract_strided_slice %10 {offsets = [0, 128], sizes = [1, 128], strides = [1, 1]} : vector<1x256xf32> to vector<1x128xf32>
    %13 = arith.addf %12, %7 : vector<1x128xf32>
    %cst_6 = arith.constant 0.000000e+00 : f32
    %14 = vector.broadcast %cst_6 : f32 to vector<1x128xf32>
    %15 = arith.maximumf %13, %14 : vector<1x128xf32>
    %16 = arith.addf %11, %15 : vector<1x128xf32>
    %c0_7 = arith.constant 0 : index
    %c0_8 = arith.constant 0 : index
    %17 = vector.load %arg4[%c0_7, %c0_8] : memref<128x128xf32, #tpu.memory_space<vmem>>, vector<128x128xf32>
    %cst_9 = arith.constant dense<0.000000e+00> : vector<1x128xf32>
    %18 = tpu.matmul %16, %17, %cst_9 {dimension_numbers = #tpu.dot_dimension_numbers<[1], [0], [0], [1], [0, 0, 1, 1], [], []>} : vector<1x128xf32>, vector<128x128xf32>, vector<1x128xf32> -> vector<1x128xf32>
    %19 = arith.addf %18, %6 : vector<1x128xf32>
    %cst_10 = arith.constant 0.000000e+00 : f32
    %20 = vector.broadcast %cst_10 : f32 to vector<1x128xf32>
    %21 = arith.maximumf %19, %20 : vector<1x128xf32>
    %22 = arith.addf %16, %21 : vector<1x128xf32>
    %c0_11 = arith.constant 0 : index
    %c0_12 = arith.constant 0 : index
    %23 = vector.load %arg5[%c0_11, %c0_12] : memref<1x128xf32, #tpu.memory_space<vmem>>, vector<1x128xf32>
    tpu.vector_store %arg5[%c0_11, %c0_12], %22 {strides = array<i32>} : memref<1x128xf32, #tpu.memory_space<vmem>>, vector<1x128xf32>,
    return
  }
  func.func @transform_0(%arg0: i32) -> (i32, i32) {
    %c0_i32 = arith.constant 0 : i32
    %c0_i32_0 = arith.constant 0 : i32
    return %arg0, %c0_i32 : i32, i32
  }
  func.func @transform_1(%arg0: i32) -> (i32, i32) {
    %c0_i32 = arith.constant 0 : i32
    %c0_i32_0 = arith.constant 0 : i32
    return %arg0, %c0_i32 : i32, i32
  }
  func.func @transform_2(%arg0: i32) -> (i32, i32) {
    %c0_i32 = arith.constant 0 : i32
    %c0_i32_0 = arith.constant 0 : i32
    %c0_i32_1 = arith.constant 0 : i32
    return %c0_i32, %c0_i32_0 : i32, i32
  }
  func.func @transform_3(%arg0: i32) -> (i32, i32) {
    %c0_i32 = arith.constant 0 : i32
    %c0_i32_0 = arith.constant 0 : i32
    %c0_i32_1 = arith.constant 0 : i32
    return %c0_i32, %c0_i32_0 : i32, i32
  }
  func.func @transform_4(%arg0: i32) -> (i32, i32) {
    %c0_i32 = arith.constant 0 : i32
    %c0_i32_0 = arith.constant 0 : i32
    return %arg0, %c0_i32 : i32, i32
  }
}

</mosaic_0001>

<llo_original>
// kernel: tpu_custom_call.1
$region0: #{tpu_custom_call.1}
  #allocation0 [shape = 'u32[]', space=smem, size = 0x4, offset = 0x4, fixed_abs, tag = 'smem constant byte address 0x4 - core index']
  #allocation1 [shape = 'u32[72,128]{1,0:T(1,128)}', space=vmem, size = 0x9000, scoped, tag = 'internal scratch']
  %s0 = inlined_call_operand.hbm [shape: f32[1,3], index: 0, kind: input, shape index: {}]
  %s1 = inlined_call_operand.hbm [shape: f32[1,8], index: 1, kind: input, shape index: {}]
  %s2 = inlined_call_operand.hbm [shape: f32[24,256], index: 2, kind: input, shape index: {}]
  %s3 = inlined_call_operand.hbm [shape: f32[128,128], index: 3, kind: input, shape index: {}]
  %s4 = inlined_call_operand.hbm [shape: f32[1,128], index: 4, kind: output, shape index: {}]
  %s5 = sld [smem:[#allocation0]]
  $region42: #{tpu_custom_call.1} parent=0
    _
  %s7 = ssub.s32 1, %s5
  %s8 = scalar_select 0, %s7, %s5
  $region1: #{tpu_custom_call.1} parent=0
    #allocation2 [shape = 'u8[512]{0}', space=vmem, size = 0x400, scoped, tag = 'input window, operand 0, single buffered']
    #allocation3 [shape = 's32[1]{0}', space=sflag, size = 0x4, scoped, tag = 'scoped memory for tpu_custom_call.1']
    #allocation4 [shape = 's32[1]{0}', space=sflag, size = 0x4, scoped, tag = 'scoped memory for tpu_custom_call.1']
    #allocation5 [shape = 'u8[512]{0}', space=vmem, size = 0x400, scoped, tag = 'input window, operand 1, single buffered']
    #allocation6 [shape = 's32[1]{0}', space=sflag, size = 0x4, scoped, tag = 'scoped memory for tpu_custom_call.1']
    #allocation7 [shape = 'u8[24576]{0}', space=vmem, size = 0x6000, scoped, tag = 'input window, operand 2, single buffered']
    #allocation8 [shape = 'u8[65536]{0}', space=vmem, size = 0x10000, scoped, tag = 'input window, operand 3, single buffered']
    #allocation9 [shape = 's32[1]{0}', space=sflag, size = 0x4, scoped, tag = 'scoped memory for tpu_custom_call.1']
    #allocation10 [shape = 'u8[512]{0}', space=vmem, size = 0x400, scoped, tag = 'output window, operand 0, single buffered']
    %9 = vsyncpa [#allocation3], 0
    %10 = vsyncpa [#allocation6], 0
    %11 = vsyncpa [#allocation9], 0
    %12 = vsyncpa [#allocation4], 0
    // Predicated region
    $region2: #{tpu_custom_call.1} parent=1 // pred_check
      _
    $region3: #{tpu_custom_call.1} parent=1 // pred_check_branch
      %14 = sbr.rel (0) target = $region5
    $region4: #{tpu_custom_call.1} parent=1 // pred_region
      %16 = vsyncadd [#allocation3], 0
      %s18 = sshll.u32 %s0, 4
      %s19 = int_to_ptr.hbm [resolvable:$true] %s18
      %s20 = sshll.u32 [#allocation2], 4
      %s21 = int_to_ptr.vmem [resolvable:$true] %s20
      %23 = dma.hbm_to_vmem [thread:$0]  %s19, 16, %s21, [#allocation3]
    $region5: #{tpu_custom_call.1} parent=1 // pred_fallthru
      _
    // Predicated region
    $region6: #{tpu_custom_call.1} parent=1 // pred_check
      _
    $region7: #{tpu_custom_call.1} parent=1 // pred_check_branch
      %25 = sbr.rel (0) target = $region9
    $region8: #{tpu_custom_call.1} parent=1 // pred_region
      %27 = vsyncadd [#allocation6], 0
      %s29 = sshll.u32 %s1, 4
      %s30 = int_to_ptr.hbm [resolvable:$true] %s29
      %s31 = sshll.u32 [#allocation5], 4
      %s32 = int_to_ptr.vmem [resolvable:$true] %s31
      %34 = dma.hbm_to_vmem [thread:$0]  %s30, 16, %s32, [#allocation6]
    $region9: #{tpu_custom_call.1} parent=1 // pred_fallthru
      _
    // Predicated region
    $region10: #{tpu_custom_call.1} parent=1 // pred_check
      _
    $region11: #{tpu_custom_call.1} parent=1 // pred_check_branch
      %36 = sbr.rel (0) target = $region13
    $region12: #{tpu_custom_call.1} parent=1 // pred_region
      %38 = vsyncadd [#allocation6], 0
      %s39 = sshll.u32 %s2, 4
      %s40 = int_to_ptr.hbm [resolvable:$true] %s39
      %s41 = sshll.u32 [#allocation7], 4
      %s42 = int_to_ptr.vmem [resolvable:$true] %s41
      %47 = dma.hbm_to_vmem [thread:$0]  %s40, 768, %s42, [#allocation6], 256, 256, 16
    $region13: #{tpu_custom_call.1} parent=1 // pred_fallthru
      _
    // Predicated region
    $region14: #{tpu_custom_call.1} parent=1 // pred_check
      _
    $region15: #{tpu_custom_call.1} parent=1 // pred_check_branch
      %49 = sbr.rel (0) target = $region17
    $region16: #{tpu_custom_call.1} parent=1 // pred_region
      %51 = vsyncadd [#allocation9], 0
      %s52 = sshll.u32 %s3, 4
      %s53 = int_to_ptr.hbm [resolvable:$true] %s52
      %s54 = sshll.u32 [#allocation8], 4
      %s55 = int_to_ptr.vmem [resolvable:$true] %s54
      %60 = dma.hbm_to_vmem [thread:$0]  %s53, 2048, %s55, [#allocation9], 128, 128, 8
    $region17: #{tpu_custom_call.1} parent=1 // pred_fallthru
      _
    // Predicated region
    $region18: #{tpu_custom_call.1} parent=1 // pred_check
      _
    $region19: #{tpu_custom_call.1} parent=1 // pred_check_branch
      %62 = sbr.rel (0) target = $region21
    $region20: #{tpu_custom_call.1} parent=1 // pred_region
      %64 = dma.done [#allocation3], 16
    $region21: #{tpu_custom_call.1} parent=1 // pred_fallthru
      _
    // Predicated region
    $region22: #{tpu_custom_call.1} parent=1 // pred_check
      _
    $region23: #{tpu_custom_call.1} parent=1 // pred_check_branch
      %66 = sbr.rel (0) target = $region25
    $region24: #{tpu_custom_call.1} parent=1 // pred_region
      %68 = dma.done [#allocation6], 16
    $region25: #{tpu_custom_call.1} parent=1 // pred_fallthru
      _
    // Predicated region
    $region26: #{tpu_custom_call.1} parent=1 // pred_check
      _
    $region27: #{tpu_custom_call.1} parent=1 // pred_check_branch
      %70 = sbr.rel (0) target = $region29
    $region28: #{tpu_custom_call.1} parent=1 // pred_region
      %72 = dma.done [#allocation6], 768
    $region29: #{tpu_custom_call.1} parent=1 // pred_fallthru
      _
    // Predicated region
    $region30: #{tpu_custom_call.1} parent=1 // pred_check
      _
    $region31: #{tpu_custom_call.1} parent=1 // pred_check_branch
      %74 = sbr.rel (0) target = $region33
    $region32: #{tpu_custom_call.1} parent=1 // pred_region
      %76 = dma.done [#allocation9], 2048
    $region33: #{tpu_custom_call.1} parent=1 // pred_fallthru
      _
    %v77 = vld [vmem:[#allocation2] sm:$0x1]
    %v78 = vld [vmem:[#allocation5] sm:$0x1]
    %v79 = vld [vmem:[#allocation7] sm:$0xff]
    %v80 = vld [vmem:[#allocation7 + $0x8] sm:$0xff]
    %v81 = vld [vmem:[#allocation7 + $0x10] sm:$0xff]
    %v82 = vld [vmem:[#allocation7 + $0x18] sm:$0xff]
    %v83 = vld [vmem:[#allocation7 + $0x20] sm:$0xff]
    %v84 = vld [vmem:[#allocation7 + $0x28] sm:$0xff]
    %vm85 = vcmask 64512
    %v87 = vsel %vm85, %v78, 0
    %89 = vmatpush.msra.mxu0 0.0
    %90 = vmatpush.msra.mxu0 0.0
    %91 = vmatpush.msra.mxu0 0.0
    %92 = vmatpush.msra.mxu0 0.0
    %93 = vmatpush.msra.mxu0 0.0
    %94 = vmatpush.msra.mxu0 0.0
    %95 = vmatpush.msra.mxu0 0.0
    %96 = vmatpush.msra.mxu0 0.0
    %97 = vmatpush.msra.mxu0 0.0
    %98 = vmatpush.msra.mxu0 0.0
    %99 = vmatpush.msra.mxu0 0.0
    %100 = vmatpush.msra.mxu0 0.0
    %101 = vmatpush.msra.mxu0 0.0
    %102 = vmatpush.msra.mxu0 0.0
    %103 = vmatpush.msra.mxu0 0.0
    %104 = vmatpush.msra.mxu0 %v81
    %105 = vmatmul.f32.gmra.mxu0 %v87
    %v106 = vpop.f32.mrf.mxu0
    %v107 = vadd.f32 0.0, %v106
    %108 = vdwg.mxu0
    %109 = vmatpush.msra.mxu0 0.0
    %110 = vmatpush.msra.mxu0 0.0
    %111 = vmatpush.msra.mxu0 0.0
    %112 = vmatpush.msra.mxu0 0.0
    %113 = vmatpush.msra.mxu0 0.0
    %114 = vmatpush.msra.mxu0 0.0
    %115 = vmatpush.msra.mxu0 0.0
    %116 = vmatpush.msra.mxu0 0.0
    %117 = vmatpush.msra.mxu0 0.0
    %118 = vmatpush.msra.mxu0 0.0
    %119 = vmatpush.msra.mxu0 0.0
    %120 = vmatpush.msra.mxu0 0.0
    %121 = vmatpush.msra.mxu0 0.0
    %122 = vmatpush.msra.mxu0 0.0
    %123 = vmatpush.msra.mxu0 0.0
    %124 = vmatpush.msra.mxu0 %v82
    %125 = vmatmul.f32.gmra.mxu0 %v87
    %v126 = vpop.f32.mrf.mxu0
    %v127 = vadd.f32 0.0, %v126
    %128 = vdwg.mxu0
    %vm129 = vcmask 23552
    %v131 = vsel %vm129, %v77, 0
    %vm133 = vcmask 1042432
    %v135 = vsel %vm133, %v79, 0
    %v138 = vsel %vm133, %v80, 0
    %140 = vmatpush.msra.mxu0 0.0
    %141 = vmatpush.msra.mxu0 0.0
    %142 = vmatpush.msra.mxu0 0.0
    %143 = vmatpush.msra.mxu0 0.0
    %144 = vmatpush.msra.mxu0 0.0
    %145 = vmatpush.msra.mxu0 0.0
    %146 = vmatpush.msra.mxu0 0.0
    %147 = vmatpush.msra.mxu0 0.0
    %148 = vmatpush.msra.mxu0 0.0
    %149 = vmatpush.msra.mxu0 0.0
    %150 = vmatpush.msra.mxu0 0.0
    %151 = vmatpush.msra.mxu0 0.0
    %152 = vmatpush.msra.mxu0 0.0
    %153 = vmatpush.msra.mxu0 0.0
    %154 = vmatpush.msra.mxu0 0.0
    %155 = vmatpush.msra.mxu0 %v135
    %156 = vmatmul.f32.gmra.mxu0 %v131
    %v157 = vpop.f32.mrf.mxu0
    %v158 = vadd.f32 %v107, %v157
    %159 = vdwg.mxu0
    %160 = vmatpush.msra.mxu0 0.0
    %161 = vmatpush.msra.mxu0 0.0
    %162 = vmatpush.msra.mxu0 0.0
    %163 = vmatpush.msra.mxu0 0.0
    %164 = vmatpush.msra.mxu0 0.0
    %165 = vmatpush.msra.mxu0 0.0
    %166 = vmatpush.msra.mxu0 0.0
    %167 = vmatpush.msra.mxu0 0.0
    %168 = vmatpush.msra.mxu0 0.0
    %169 = vmatpush.msra.mxu0 0.0
    %170 = vmatpush.msra.mxu0 0.0
    %171 = vmatpush.msra.mxu0 0.0
    %172 = vmatpush.msra.mxu0 0.0
    %173 = vmatpush.msra.mxu0 0.0
    %174 = vmatpush.msra.mxu0 0.0
    %175 = vmatpush.msra.mxu0 %v138
    %176 = vmatmul.f32.gmra.mxu0 %v131
    %v177 = vpop.f32.mrf.mxu0
    %v178 = vadd.f32 %v127, %v177
    %179 = vdwg.mxu0
    %v180 = vadd.f32 %v178, %v84
    %v181 = vmax.f32 %v180, 0.0
    %v182 = vadd.f32 %v158, %v181
    %v183 = vld [vmem:[#allocation8] sm:$0xff]
    %v184 = vld [vmem:[#allocation8 + $0x8] sm:$0xff]
    %v185 = vld [vmem:[#allocation8 + $0x10] sm:$0xff]
    %v186 = vld [vmem:[#allocation8 + $0x18] sm:$0xff]
    %v187 = vld [vmem:[#allocation8 + $0x20] sm:$0xff]
    %v188 = vld [vmem:[#allocation8 + $0x28] sm:$0xff]
    %v189 = vld [vmem:[#allocation8 + $0x30] sm:$0xff]
    %v190 = vld [vmem:[#allocation8 + $0x38] sm:$0xff]
    %v191 = vld [vmem:[#allocation8 + $0x40] sm:$0xff]
    %v192 = vld [vmem:[#allocation8 + $0x48] sm:$0xff]
    %v193 = vld [vmem:[#allocation8 + $0x50] sm:$0xff]
    %v194 = vld [vmem:[#allocation8 + $0x58] sm:$0xff]
    %v195 = vld [vmem:[#allocation8 + $0x60] sm:$0xff]
    %v196 = vld [vmem:[#allocation8 + $0x68] sm:$0xff]
    %v197 = vld [vmem:[#allocation8 + $0x70] sm:$0xff]
    %v198 = vld [vmem:[#allocation8 + $0x78] sm:$0xff]
    %199 = vmatpush.msra.mxu0 %v198
    %200 = vmatpush.msra.mxu0 %v197
    %201 = vmatpush.msra.mxu0 %v196
    %202 = vmatpush.msra.mxu0 %v195
    %203 = vmatpush.msra.mxu0 %v194
    %204 = vmatpush.msra.mxu0 %v193
    %205 = vmatpush.msra.mxu0 %v192
    %206 = vmatpush.msra.mxu0 %v191
    %207 = vmatpush.msra.mxu0 %v190
    %208 = vmatpush.msra.mxu0 %v189
    %209 = vmatpush.msra.mxu0 %v188
    %210 = vmatpush.msra.mxu0 %v187
    %211 = vmatpush.msra.mxu0 %v186
    %212 = vmatpush.msra.mxu0 %v185
    %213 = vmatpush.msra.mxu0 %v184
    %214 = vmatpush.msra.mxu0 %v183
    %215 = vmatmul.f32.gmra.mxu0 %v182
    %v216 = vpop.f32.mrf.mxu0
    %v217 = vadd.f32 %v83, %v216
    %218 = vdwg.mxu0
    %v219 = vmax.f32 %v217, 0.0
    %v220 = vadd.f32 %v182, %v219
    %221 = vst [vmem:[#allocation10] sm:$0x1] %v220
    // Predicated region
    $region34: #{tpu_custom_call.1} parent=1 // pred_check
      _
    $region35: #{tpu_custom_call.1} parent=1 // pred_check_branch
      %223 = sbr.rel (0) target = $region37
    $region36: #{tpu_custom_call.1} parent=1 // pred_region
      %225 = vsyncadd [#allocation4], 0
      %s227 = sshll.u32 [#allocation10], 4
      %s228 = int_to_ptr.vmem [resolvable:$true] %s227
      %s229 = sshll.u32 %s4, 4
      %s230 = int_to_ptr.hbm [resolvable:$true] %s229
      %232 = dma.vmem_to_hbm [thread:$0]  %s228, 16, %s230, [#allocation4]
    $region37: #{tpu_custom_call.1} parent=1 // pred_fallthru
      _
    // Predicated region
    $region38: #{tpu_custom_call.1} parent=1 // pred_check
      _
    $region39: #{tpu_custom_call.1} parent=1 // pred_check_branch
      %234 = sbr.rel (0) target = $region41
    $region40: #{tpu_custom_call.1} parent=1 // pred_region
      %236 = dma.done [#allocation4], 16
    $region41: #{tpu_custom_call.1} parent=1 // pred_fallthru
      _
    %237 = vsyncpa [#allocation3], 1
    %238 = vsyncpa [#allocation6], 1
    %239 = vsyncpa [#allocation9], 1
    %240 = vsyncpa [#allocation4], 1

</llo_original>
